<compile_context>
chip_gen: v7x
topology: tpu7x:2x2x1
jax: 0.10.0
libtpu: 0.0.40
codegen_flags: <defaults>
</compile_context>

<pallas_src>
import functools
import math

import numpy as np
import jax
import jax.numpy as jnp
from jax.experimental import pallas as pl
from jax.experimental.pallas import tpu as pltpu


def _round_up(x, m):
    return ((x + m - 1) // m) * m


def _strict_lt_int(t):
    """Largest integer strictly less than float t (so integer d: d < t <=> d <= thr)."""
    f = math.floor(t)
    return int(f - 1) if f == t else int(f)


def _gaussian_taps(sigma, truncate=4.0):
    radius = int(truncate * float(sigma) + 0.5)
    t = np.arange(-radius, radius + 1, dtype=np.float64)
    phi = np.exp(-0.5 * (t / max(float(sigma), 1e-12)) ** 2)
    phi /= phi.sum()
    return radius, phi


def _gaussian_blur_matrix(n, sigma, truncate=4.0):
    """Dense n x n matrix == 1-D gaussian filter, skimage defaults (truncate=4, mode='nearest')."""
    radius, phi = _gaussian_taps(sigma, truncate)
    mat = np.zeros((n, n), dtype=np.float64)
    for i in range(n):
        for k in range(-radius, radius + 1):
            j = min(max(i + k, 0), n - 1)
            mat[i, j] += phi[k + radius]
    return mat.astype(np.float32)


@functools.lru_cache(maxsize=None)
def _glass_blur_constants(H, W, C, P, sigma):
    """Host constants, cached per (H, W, C, sigma); become jit-trace-time constants."""
    WC = W * C
    # lane -> pixel-column map (-1 in the padding lanes)
    wcol = np.full((1, P), -1, dtype=np.int32)
    wcol[0, :WC] = np.arange(WC, dtype=np.int32) // C
    # row blur: dense (H, H) matrix ('nearest' baked in), one MXU matmul
    bh = _gaussian_blur_matrix(H, sigma)
    # column blur: (2R+1) lane-roll taps; 'nearest' folded into per-lane weights
    # (out-of-range tap weight is added to the tap hitting the clamped column,
    #  which is always within radius of the destination pixel column).
    R, phi = _gaussian_taps(sigma)
    colw = np.zeros((2 * R + 1, P), dtype=np.float32)
    for w in range(W):
        for k in range(-R, R + 1):
            kf = min(max(w + k, 0), W - 1) - w          # folded tap, |kf| <= R
            colw[kf + R, w * C:(w + 1) * C] += phi[k + R]
    return R, bh, colw, wcol


def _glass_blur_kernel(params_ref, img_ref, wcol_ref, dx_ref, dy_ref, bh_ref,
                       colw_ref, out_ref, *, H, W, C, P, r, R, n_radii):
    """Single-invocation kernel (grid=()), everything resident in VMEM/SMEM.

    params_ref : (4*n,) i32 SMEM   [cx..., cy..., thr_swap..., thr_clean...]
    img_ref    : (H, P)  u8        HWC image viewed as (H, W*C), zero-padded to P lanes
    wcol_ref   : (1, P)  i32       pixel column per lane (-1 in the pad lanes)
    dx_ref/dy_ref : (H, P) i8      per-pixel row / col offset in [-r, r), repeated over C
    bh_ref     : (H, H)  bf16      row-blur matrix ('nearest' baked in)
    colw_ref   : (2R+1, P) f32     per-lane column-blur tap weights ('nearest' folded in)
    out_ref    : (H, P)  u8
    """
    x = img_ref[...].astype(jnp.int32)                                     # (H, P)

    rows_i = jax.lax.broadcasted_iota(jnp.int32, (H, P), 0)
    cols_i = jnp.broadcast_to(wcol_ref[...], (H, P))                       # pixel column w

    # reference loop bounds: range(r, dim - r + 1) -> [r, dim - r]
    in_range = ((rows_i >= r) & (rows_i <= H - r) &
                (cols_i >= r) & (cols_i <= W - r))

    # dists = (cx - w)**2 + (cy - h)**2 (exactly the reference quirk), all-integer;
    # the float "< radius**2" thresholds were turned into "<= thr" ints on the host.
    close_swap = None
    close_clean = None
    for k in range(n_radii):
        cx_k = params_ref[k]
        cy_k = params_ref[n_radii + k]
        d = (cx_k - cols_i) ** 2 + (cy_k - rows_i) ** 2
        cs = d <= params_ref[2 * n_radii + k]
        cc = d <= params_ref[3 * n_radii + k]
        close_swap = cs if close_swap is None else (close_swap | cs)
        close_clean = cc if close_clean is None else (close_clean | cc)

    swap_mask = in_range & jnp.logical_not(close_swap)
    restore_mask = in_range & close_clean

    dx = dx_ref[...].astype(jnp.int32)
    dy = dy_ref[...].astype(jnp.int32)

    # 2-D glass gather on the integer plane: g[h, w] = x[h + dx, w + dy].
    # pltpu.roll wraps, but swap_mask confines rows/cols to [r, dim - r] and the
    # offsets to [-r, r), so wrapped values are never selected.
    # TODO(synk): for large r switch to lax.fori_loop with dynamic roll shifts to
    # bound live ranges / avoid the O(r^2) unroll (v7x 64 MiB VMEM).
    g = x
    for di in range(-r, r):
        xr = x if di == 0 else pltpu.roll(x, (-di) % H, 0)
        sel_row = swap_mask & (dx == di)
        for dj in range(-r, r):
            if di == 0 and dj == 0:
                continue
            src = xr if dj == 0 else pltpu.roll(xr, (-dj * C) % P, 1)
            g = jnp.where(sel_row & (dy == dj), src, g)

    # --- separable gaussian blur: clip(gauss(x/255),0,1)*255 == clip(gauss(x),0,255) ---
    # rows: one MXU matmul (bf16 operands are exact for the integer-valued image)
    gb = g.astype(jnp.float32).astype(jnp.bfloat16)
    b1 = jnp.dot(bh_ref[...], gb, preferred_element_type=jnp.float32)      # (H, P) f32
    # columns: (2R+1) lane-roll taps with per-lane weights, f32 throughout
    b2 = colw_ref[R:R + 1, :] * b1
    for j in range(2 * R + 1):
        if j == R:
            continue
        k = j - R
        b2 = b2 + colw_ref[j:j + 1, :] * pltpu.roll(b1, (-k * C) % P, 1)

    blurred = jnp.clip(b2, 0.0, 255.0).astype(jnp.int32)    # np.uint8(...) truncates
    out = jnp.where(restore_mask, x, blurred)
    out_ref[...] = out.astype(jnp.uint8)


@functools.partial(jax.jit, static_argnames=("r", "sigma"))
def _glass_blur_apply(img, key, params, *, r, sigma):
    H, W, C = img.shape
    WC = W * C
    P = _round_up(max(WC, 1), 128)                      # lane-dense working width
    n_radii = params.shape[0] // 4

    R, bh_np, colw_np, wcol_np = _glass_blur_constants(H, W, C, P, float(sigma))

    # cheap u8/i8 relayouts only (no f32 image in HBM)
    img_flat = jnp.pad(img.reshape(H, WC), ((0, 0), (0, P - WC)))

    kdx, kdy = jax.random.split(key)
    if r > 0:
        dx_map = jax.random.randint(kdx, (H, W), -r, r, dtype=jnp.int32)
        dy_map = jax.random.randint(kdy, (H, W), -r, r, dtype=jnp.int32)
    else:
        dx_map = jnp.zeros((H, W), jnp.int32)
        dy_map = jnp.zeros((H, W), jnp.int32)
    dx_i8 = jnp.pad(jnp.repeat(dx_map, C, axis=1), ((0, 0), (0, P - WC))).astype(jnp.int8)
    dy_i8 = jnp.pad(jnp.repeat(dy_map, C, axis=1), ((0, 0), (0, P - WC))).astype(jnp.int8)

    bh = jnp.asarray(bh_np, dtype=jnp.bfloat16)         # trace-time constants
    colw = jnp.asarray(colw_np)
    wcol = jnp.asarray(wcol_np)

    kernel = functools.partial(_glass_blur_kernel, H=H, W=W, C=C, P=P,
                               r=int(r), R=R, n_radii=n_radii)

    # VMEM budget: u8/i8 operands + small constants + live i32/f32 temporaries,
    # x2 margin, capped at 75% of the chip's VMEM (v7x has only 64 MiB).
    est = (4 * H * P                                        # img, out, dx, dy
           + 4 * P + 2 * H * H + 4 * (2 * R + 1) * P        # wcol, bh, colw
           + 18 * 4 * H * P)                                # live i32/f32 planes
    try:
        cap = int(pltpu.get_tpu_info().vmem_capacity_bytes)
    except Exception:
        cap = 64 * 2 ** 20                                  # conservative fallback
    vmem_limit = int(min(int(0.75 * cap), max(32 * 2 ** 20, 2 * est)))

    vmem = pl.BlockSpec(memory_space=pltpu.MemorySpace.VMEM)
    smem = pl.BlockSpec(memory_space=pltpu.MemorySpace.SMEM)
    out_flat = pl.pallas_call(
        kernel,
        out_shape=jax.ShapeDtypeStruct((H, P), jnp.uint8),
        in_specs=[smem, vmem, vmem, vmem, vmem, vmem, vmem],
        out_specs=vmem,
        compiler_params=pltpu.CompilerParams(vmem_limit_bytes=vmem_limit),
    )(params, img_flat, wcol, dx_i8, dy_i8, bh, colw)

    # strip lane padding; reference returns np.uint8 HWC
    return out_flat[:, :WC].reshape(H, W, C)


class GlassBlurPallas:
    def __init__(self, radii=(0.0, 0.0), max_displacement=0, ksize=1,
                 sigma=1.0, iterations=1, seed=0):
        self.max_displacement = int(max_displacement)
        self.iterations = int(iterations)                  # collapsed, see TODO at top
        self.radii = tuple(float(v) for v in radii)
        self.sradii = [v ** 2 for v in self.radii]
        self.sclean = [max(v - ksize, 0.0) ** 2 for v in self.radii]
        self.ksize = int(ksize)
        self.sigma = float(sigma)
        self._rng = np.random.RandomState(seed)            # deterministic center jitter

    def _get_centers(self, w, h):
        cx = w // 2
        cy = h // 2
        dx = np.zeros(len(self.sradii))
        dy = np.zeros(len(self.sradii))
        if self.max_displacement > 0:
            dx, dy = self._rng.randint(-self.max_displacement,
                                       self.max_displacement,
                                       size=(2, len(self.sradii)))
        return (cx + dx, cy + dy)

    def __call__(self, img_hwc_u8, key):
        H, W, C = img_hwc_u8.shape
        # reference names shape[0] "width" and shape[1] "height"
        cx, cy = self._get_centers(H, W)
        cx = np.asarray(cx).reshape(-1)
        cy = np.asarray(cy).reshape(-1)
        n = len(self.sradii)
        params = np.zeros((4 * n,), dtype=np.int32)
        params[0:n] = np.round(cx).astype(np.int32)
        params[n:2 * n] = np.round(cy).astype(np.int32)
        params[2 * n:3 * n] = [_strict_lt_int(t) for t in self.sradii]
        params[3 * n:4 * n] = [_strict_lt_int(t) for t in self.sclean]
        return _glass_blur_apply(jnp.asarray(img_hwc_u8, dtype=jnp.uint8),
                                 key, jnp.asarray(params),
                                 r=self.ksize, sigma=self.sigma)


if __name__ == "__main__":
    key = jax.random.PRNGKey(0)
    k_img, k_disp1, k_disp2 = jax.random.split(key, 3)

    H, W, C = 16, 16, 3
    img = jax.random.randint(k_img, (H, W, C), 0, 256,
                             dtype=jnp.int32).astype(jnp.uint8)

    glass = GlassBlurPallas(radii=(4.0, 2.0), max_displacement=0,
                            ksize=1, sigma=1.0, iterations=1)
    out = jax.block_until_ready(glass(img, k_disp1))
    # second call with a fresh key: hits the jit / constant caches (no retrace)
    out2 = jax.block_until_ready(glass(img, k_disp2))

    assert out.shape == (H, W, C), out.shape
    assert out.dtype == jnp.uint8, out.dtype
    assert out2.shape == (H, W, C) and out2.dtype == jnp.uint8
    print("KERNEL_OK")
</pallas_src>

<mosaic_0001>
module attributes {stable_mosaic.version = 11 : i64} {
  func.func @_glass_blur_kernel(%arg0: memref<8xi32, #tpu.memory_space<smem>>, %arg1: memref<16x128xi8, #tpu.memory_space<vmem>>, %arg2: memref<1x128xi32, #tpu.memory_space<vmem>>, %arg3: memref<16x128xi8, #tpu.memory_space<vmem>>, %arg4: memref<16x128xi8, #tpu.memory_space<vmem>>, %arg5: memref<16x16xbf16, #tpu.memory_space<vmem>>, %arg6: memref<9x128xf32, #tpu.memory_space<vmem>>, %arg7: memref<16x128xi8, #tpu.memory_space<vmem>>) attributes {dimension_semantics = [], scalar_prefetch = 0 : i64, scratch_operands = 0 : i64, tpu.core_type = #tpu.core_type<tc>} {
    %c0 = arith.constant 0 : index
    %c0_0 = arith.constant 0 : index
    %0 = vector.load %arg1[%c0, %c0_0] : memref<16x128xi8, #tpu.memory_space<vmem>>, vector<16x128xi8>
    %1 = arith.extui %0 : vector<16x128xi8> to vector<16x128xi32>
    %2 = tpu.iota {dimensions = array<i32: 0>} : vector<16x128xi32>
    %c0_1 = arith.constant 0 : index
    %c0_2 = arith.constant 0 : index
    %3 = vector.load %arg2[%c0_1, %c0_2] : memref<1x128xi32, #tpu.memory_space<vmem>>, vector<1x128xi32>
    %4 = vector.shape_cast %3 : vector<1x128xi32> to vector<1x128xi32>
    %5 = vector.broadcast %4 : vector<1x128xi32> to vector<16x128xi32>
    %c1_i32 = arith.constant 1 : i32
    %6 = vector.broadcast %c1_i32 : i32 to vector<16x128xi32>
    %7 = arith.cmpi sge, %2, %6 : vector<16x128xi32>
    %c15_i32 = arith.constant 15 : i32
    %8 = vector.broadcast %c15_i32 : i32 to vector<16x128xi32>
    %9 = arith.cmpi sle, %2, %8 : vector<16x128xi32>
    %10 = arith.andi %7, %9 : vector<16x128xi1>
    %c1_i32_3 = arith.constant 1 : i32
    %11 = vector.broadcast %c1_i32_3 : i32 to vector<16x128xi32>
    %12 = arith.cmpi sge, %5, %11 : vector<16x128xi32>
    %13 = arith.andi %10, %12 : vector<16x128xi1>
    %c15_i32_4 = arith.constant 15 : i32
    %14 = vector.broadcast %c15_i32_4 : i32 to vector<16x128xi32>
    %15 = arith.cmpi sle, %5, %14 : vector<16x128xi32>
    %16 = arith.andi %13, %15 : vector<16x128xi1>
    %c0_5 = arith.constant 0 : index
    %17 = memref.load %arg0[%c0_5] : memref<8xi32, #tpu.memory_space<smem>>
    %c2 = arith.constant 2 : index
    %18 = memref.load %arg0[%c2] : memref<8xi32, #tpu.memory_space<smem>>
    %19 = vector.broadcast %17 : i32 to vector<16x128xi32>
    %20 = arith.subi %19, %5 : vector<16x128xi32>
    %21 = arith.muli %20, %20 : vector<16x128xi32>
    %22 = vector.broadcast %18 : i32 to vector<16x128xi32>
    %23 = arith.subi %22, %2 : vector<16x128xi32>
    %24 = arith.muli %23, %23 : vector<16x128xi32>
    %25 = arith.addi %21, %24 : vector<16x128xi32>
    %c4 = arith.constant 4 : index
    %26 = memref.load %arg0[%c4] : memref<8xi32, #tpu.memory_space<smem>>
    %27 = vector.broadcast %26 : i32 to vector<16x128xi32>
    %28 = arith.cmpi sle, %25, %27 : vector<16x128xi32>
    %c6 = arith.constant 6 : index
    %29 = memref.load %arg0[%c6] : memref<8xi32, #tpu.memory_space<smem>>
    %30 = vector.broadcast %29 : i32 to vector<16x128xi32>
    %31 = arith.cmpi sle, %25, %30 : vector<16x128xi32>
    %c1 = arith.constant 1 : index
    %32 = memref.load %arg0[%c1] : memref<8xi32, #tpu.memory_space<smem>>
    %c3 = arith.constant 3 : index
    %33 = memref.load %arg0[%c3] : memref<8xi32, #tpu.memory_space<smem>>
    %34 = vector.broadcast %32 : i32 to vector<16x128xi32>
    %35 = arith.subi %34, %5 : vector<16x128xi32>
    %36 = arith.muli %35, %35 : vector<16x128xi32>
    %37 = vector.broadcast %33 : i32 to vector<16x128xi32>
    %38 = arith.subi %37, %2 : vector<16x128xi32>
    %39 = arith.muli %38, %38 : vector<16x128xi32>
    %40 = arith.addi %36, %39 : vector<16x128xi32>
    %c5 = arith.constant 5 : index
    %41 = memref.load %arg0[%c5] : memref<8xi32, #tpu.memory_space<smem>>
    %42 = vector.broadcast %41 : i32 to vector<16x128xi32>
    %43 = arith.cmpi sle, %40, %42 : vector<16x128xi32>
    %c7 = arith.constant 7 : index
    %44 = memref.load %arg0[%c7] : memref<8xi32, #tpu.memory_space<smem>>
    %45 = vector.broadcast %44 : i32 to vector<16x128xi32>
    %46 = arith.cmpi sle, %40, %45 : vector<16x128xi32>
    %47 = arith.ori %28, %43 : vector<16x128xi1>
    %48 = arith.ori %31, %46 : vector<16x128xi1>
    %cst = arith.constant dense<true> : vector<16x128xi1>
    %49 = arith.xori %47, %cst : vector<16x128xi1>
    %50 = arith.andi %16, %49 : vector<16x128xi1>
    %51 = arith.andi %16, %48 : vector<16x128xi1>
    %c0_6 = arith.constant 0 : index
    %c0_7 = arith.constant 0 : index
    %52 = vector.load %arg3[%c0_6, %c0_7] : memref<16x128xi8, #tpu.memory_space<vmem>>, vector<16x128xi8>
    %53 = arith.extsi %52 : vector<16x128xi8> to vector<16x128xi32>
    %c0_8 = arith.constant 0 : index
    %c0_9 = arith.constant 0 : index
    %54 = vector.load %arg4[%c0_8, %c0_9] : memref<16x128xi8, #tpu.memory_space<vmem>>, vector<16x128xi8>
    %55 = arith.extsi %54 : vector<16x128xi8> to vector<16x128xi32>
    %c1_i32_10 = arith.constant 1 : i32
    %56 = tpu.dynamic_rotate %1 by %c1_i32_10 dim 0 : vector<16x128xi32>, i32 -> vector<16x128xi32>
    %c-1_i32 = arith.constant -1 : i32
    %57 = vector.broadcast %c-1_i32 : i32 to vector<16x128xi32>
    %58 = arith.cmpi eq, %53, %57 : vector<16x128xi32>
    %59 = arith.andi %50, %58 : vector<16x128xi1>
    %c3_i32 = arith.constant 3 : i32
    %60 = tpu.dynamic_rotate %56 by %c3_i32 dim 1 : vector<16x128xi32>, i32 -> vector<16x128xi32>
    %c-1_i32_11 = arith.constant -1 : i32
    %61 = vector.broadcast %c-1_i32_11 : i32 to vector<16x128xi32>
    %62 = arith.cmpi eq, %55, %61 : vector<16x128xi32>
    %63 = arith.andi %59, %62 : vector<16x128xi1>
    %64 = arith.select %63, %60, %1 : vector<16x128xi1>, vector<16x128xi32>
    %c0_i32 = arith.constant 0 : i32
    %65 = vector.broadcast %c0_i32 : i32 to vector<16x128xi32>
    %66 = arith.cmpi eq, %55, %65 : vector<16x128xi32>
    %67 = arith.andi %59, %66 : vector<16x128xi1>
    %68 = arith.select %67, %56, %64 : vector<16x128xi1>, vector<16x128xi32>
    %c0_i32_12 = arith.constant 0 : i32
    %69 = vector.broadcast %c0_i32_12 : i32 to vector<16x128xi32>
    %70 = arith.cmpi eq, %53, %69 : vector<16x128xi32>
    %71 = arith.andi %50, %70 : vector<16x128xi1>
    %c3_i32_13 = arith.constant 3 : i32
    %72 = tpu.dynamic_rotate %1 by %c3_i32_13 dim 1 : vector<16x128xi32>, i32 -> vector<16x128xi32>
    %c-1_i32_14 = arith.constant -1 : i32
    %73 = vector.broadcast %c-1_i32_14 : i32 to vector<16x128xi32>
    %74 = arith.cmpi eq, %55, %73 : vector<16x128xi32>
    %75 = arith.andi %71, %74 : vector<16x128xi1>
    %76 = arith.select %75, %72, %68 : vector<16x128xi1>, vector<16x128xi32>
    %77 = arith.sitofp %76 : vector<16x128xi32> to vector<16x128xf32>
    %78 = arith.truncf %77 : vector<16x128xf32> to vector<16x128xbf16>
    %c0_15 = arith.constant 0 : index
    %c0_16 = arith.constant 0 : index
    %79 = vector.load %arg5[%c0_15, %c0_16] : memref<16x16xbf16, #tpu.memory_space<vmem>>, vector<16x16xbf16>
    %cst_17 = arith.constant dense<0.000000e+00> : vector<16x128xf32>
    %80 = tpu.matmul %79, %78, %cst_17 {dimension_numbers = #tpu.dot_dimension_numbers<[1], [0], [0], [1], [0, 0, 1, 1], [], []>} : vector<16x16xbf16>, vector<16x128xbf16>, vector<16x128xf32> -> vector<16x128xf32>
    %c4_18 = arith.constant 4 : index
    %c0_19 = arith.constant 0 : index
    %81 = vector.load %arg6[%c4_18, %c0_19] : memref<9x128xf32, #tpu.memory_space<vmem>>, vector<1x128xf32>
    %82 = vector.broadcast %81 : vector<1x128xf32> to vector<16x128xf32>
    %83 = arith.mulf %82, %80 : vector<16x128xf32>
    %c0_20 = arith.constant 0 : index
    %c0_21 = arith.constant 0 : index
    %84 = vector.load %arg6[%c0_20, %c0_21] : memref<9x128xf32, #tpu.memory_space<vmem>>, vector<1x128xf32>
    %c12_i32 = arith.constant 12 : i32
    %85 = tpu.dynamic_rotate %80 by %c12_i32 dim 1 : vector<16x128xf32>, i32 -> vector<16x128xf32>
    %86 = vector.broadcast %84 : vector<1x128xf32> to vector<16x128xf32>
    %87 = arith.mulf %86, %85 : vector<16x128xf32>
    %88 = arith.addf %83, %87 : vector<16x128xf32>
    %c1_22 = arith.constant 1 : index
    %c0_23 = arith.constant 0 : index
    %89 = vector.load %arg6[%c1_22, %c0_23] : memref<9x128xf32, #tpu.memory_space<vmem>>, vector<1x128xf32>
    %c9_i32 = arith.constant 9 : i32
    %90 = tpu.dynamic_rotate %80 by %c9_i32 dim 1 : vector<16x128xf32>, i32 -> vector<16x128xf32>
    %91 = vector.broadcast %89 : vector<1x128xf32> to vector<16x128xf32>
    %92 = arith.mulf %91, %90 : vector<16x128xf32>
    %93 = arith.addf %88, %92 : vector<16x128xf32>
    %c2_24 = arith.constant 2 : index
    %c0_25 = arith.constant 0 : index
    %94 = vector.load %arg6[%c2_24, %c0_25] : memref<9x128xf32, #tpu.memory_space<vmem>>, vector<1x128xf32>
    %c6_i32 = arith.constant 6 : i32
    %95 = tpu.dynamic_rotate %80 by %c6_i32 dim 1 : vector<16x128xf32>, i32 -> vector<16x128xf32>
    %96 = vector.broadcast %94 : vector<1x128xf32> to vector<16x128xf32>
    %97 = arith.mulf %96, %95 : vector<16x128xf32>
    %98 = arith.addf %93, %97 : vector<16x128xf32>
    %c3_26 = arith.constant 3 : index
    %c0_27 = arith.constant 0 : index
    %99 = vector.load %arg6[%c3_26, %c0_27] : memref<9x128xf32, #tpu.memory_space<vmem>>, vector<1x128xf32>
    %c3_i32_28 = arith.constant 3 : i32
    %100 = tpu.dynamic_rotate %80 by %c3_i32_28 dim 1 : vector<16x128xf32>, i32 -> vector<16x128xf32>
    %101 = vector.broadcast %99 : vector<1x128xf32> to vector<16x128xf32>
    %102 = arith.mulf %101, %100 : vector<16x128xf32>
    %103 = arith.addf %98, %102 : vector<16x128xf32>
    %c5_29 = arith.constant 5 : index
    %c0_30 = arith.constant 0 : index
    %104 = vector.load %arg6[%c5_29, %c0_30] : memref<9x128xf32, #tpu.memory_space<vmem>>, vector<1x128xf32>
    %c125_i32 = arith.constant 125 : i32
    %105 = tpu.dynamic_rotate %80 by %c125_i32 dim 1 : vector<16x128xf32>, i32 -> vector<16x128xf32>
    %106 = vector.broadcast %104 : vector<1x128xf32> to vector<16x128xf32>
    %107 = arith.mulf %106, %105 : vector<16x128xf32>
    %108 = arith.addf %103, %107 : vector<16x128xf32>
    %c6_31 = arith.constant 6 : index
    %c0_32 = arith.constant 0 : index
    %109 = vector.load %arg6[%c6_31, %c0_32] : memref<9x128xf32, #tpu.memory_space<vmem>>, vector<1x128xf32>
    %c122_i32 = arith.constant 122 : i32
    %110 = tpu.dynamic_rotate %80 by %c122_i32 dim 1 : vector<16x128xf32>, i32 -> vector<16x128xf32>
    %111 = vector.broadcast %109 : vector<1x128xf32> to vector<16x128xf32>
    %112 = arith.mulf %111, %110 : vector<16x128xf32>
    %113 = arith.addf %108, %112 : vector<16x128xf32>
    %c7_33 = arith.constant 7 : index
    %c0_34 = arith.constant 0 : index
    %114 = vector.load %arg6[%c7_33, %c0_34] : memref<9x128xf32, #tpu.memory_space<vmem>>, vector<1x128xf32>
    %c119_i32 = arith.constant 119 : i32
    %115 = tpu.dynamic_rotate %80 by %c119_i32 dim 1 : vector<16x128xf32>, i32 -> vector<16x128xf32>
    %116 = vector.broadcast %114 : vector<1x128xf32> to vector<16x128xf32>
    %117 = arith.mulf %116, %115 : vector<16x128xf32>
    %118 = arith.addf %113, %117 : vector<16x128xf32>
    %c8 = arith.constant 8 : index
    %c0_35 = arith.constant 0 : index
    %119 = vector.load %arg6[%c8, %c0_35] : memref<9x128xf32, #tpu.memory_space<vmem>>, vector<1x128xf32>
    %c116_i32 = arith.constant 116 : i32
    %120 = tpu.dynamic_rotate %80 by %c116_i32 dim 1 : vector<16x128xf32>, i32 -> vector<16x128xf32>
    %121 = vector.broadcast %119 : vector<1x128xf32> to vector<16x128xf32>
    %122 = arith.mulf %121, %120 : vector<16x128xf32>
    %123 = arith.addf %118, %122 : vector<16x128xf32>
    %cst_36 = arith.constant 0.000000e+00 : f32
    %cst_37 = arith.constant 2.550000e+02 : f32
    %124 = vector.broadcast %cst_36 : f32 to vector<16x128xf32>
    %125 = arith.maximumf %124, %123 : vector<16x128xf32>
    %126 = vector.broadcast %cst_37 : f32 to vector<16x128xf32>
    %127 = arith.minimumf %126, %125 : vector<16x128xf32>
    %128 = arith.fptosi %127 : vector<16x128xf32> to vector<16x128xi32>
    %129 = arith.select %51, %1, %128 : vector<16x128xi1>, vector<16x128xi32>
    %130 = arith.trunci %129 : vector<16x128xi32> to vector<16x128xi8>
    %c0_38 = arith.constant 0 : index
    %c0_39 = arith.constant 0 : index
    %131 = vector.load %arg7[%c0_38, %c0_39] : memref<16x128xi8, #tpu.memory_space<vmem>>, vector<16x128xi8>
    tpu.vector_store %arg7[%c0_38, %c0_39], %130 {strides = array<i32>} : memref<16x128xi8, #tpu.memory_space<vmem>>, vector<16x128xi8>,
    return
  }
}

</mosaic_0001>

<llo_original>
// kernel: _glass_blur_apply.1
$region0: #{_glass_blur_apply.1}
  #allocation0 [shape = 'u32[]', space=smem, size = 0x4, offset = 0x4, fixed_abs, tag = 'smem constant byte address 0x4 - core index']
  #allocation1 [shape = 'u32[144,128]{1,0:T(1,128)}', space=vmem, size = 0x12000, scoped, tag = 'internal scratch']
  %s0 = inlined_call_operand.vmem [shape: s32[8], index: 0, kind: input, shape index: {}]
  %s1 = inlined_call_operand.vmem [shape: u8[16,128], index: 1, kind: input, shape index: {}]
  %s2 = inlined_call_operand.vmem [shape: s32[1,128], index: 2, kind: input, shape index: {}]
  %s3 = inlined_call_operand.vmem [shape: s8[16,128], index: 3, kind: input, shape index: {}]
  %s4 = inlined_call_operand.vmem [shape: s8[16,128], index: 4, kind: input, shape index: {}]
  %s5 = inlined_call_operand.vmem [shape: bf16[16,16], index: 5, kind: input, shape index: {}]
  %s6 = inlined_call_operand.vmem [shape: f32[9,128], index: 6, kind: input, shape index: {}]
  %s7 = inlined_call_operand.vmem [shape: u8[16,128], index: 7, kind: output, shape index: {}]
  %s8 = sld [smem:[#allocation0]]
  $region42: #{_glass_blur_apply.1} parent=0
    _
  %s10 = ssub.s32 1, %s8
  %s11 = scalar_select 0, %s10, %s8
  $region1: #{_glass_blur_apply.1} parent=0
    #allocation2 [shape = 'u8[512]{0}', space=smem, size = 0x200, scoped, tag = 'input window, operand 0, single buffered']
    #allocation3 [shape = 's32[1]{0}', space=sflag, size = 0x4, scoped, tag = 'scoped memory for _glass_blur_apply.1']
    %12 = vsyncpa [#allocation3], 0
    // Predicated region
    $region2: #{_glass_blur_apply.1} parent=1 // pred_check
      _
    $region3: #{_glass_blur_apply.1} parent=1 // pred_check_branch
      %14 = sbr.rel (0) target = $region5
    $region4: #{_glass_blur_apply.1} parent=1 // pred_region
      %s16 = ssub.s32 16, 16
      %17 = vsyncadd [#allocation3], %s16
      %s19 = sshll.u32 %s0, 4
      %s20 = int_to_ptr.vmem [resolvable:$true] %s19
      %22 = dma.vmem_to_smem %s20, 16, [#allocation2], [#allocation3]
    $region5: #{_glass_blur_apply.1} parent=1 // pred_fallthru
      _
    // Predicated region
    $region6: #{_glass_blur_apply.1} parent=1 // pred_check
      _
    $region7: #{_glass_blur_apply.1} parent=1 // pred_check_branch
      %24 = sbr.rel (0) target = $region9
    $region8: #{_glass_blur_apply.1} parent=1 // pred_region
      _
    $region9: #{_glass_blur_apply.1} parent=1 // pred_fallthru
      _
    // Predicated region
    $region10: #{_glass_blur_apply.1} parent=1 // pred_check
      _
    $region11: #{_glass_blur_apply.1} parent=1 // pred_check_branch
      %26 = sbr.rel (0) target = $region13
    $region12: #{_glass_blur_apply.1} parent=1 // pred_region
      _
    $region13: #{_glass_blur_apply.1} parent=1 // pred_fallthru
      _
    // Predicated region
    $region14: #{_glass_blur_apply.1} parent=1 // pred_check
      _
    $region15: #{_glass_blur_apply.1} parent=1 // pred_check_branch
      %28 = sbr.rel (0) target = $region17
    $region16: #{_glass_blur_apply.1} parent=1 // pred_region
      _
    $region17: #{_glass_blur_apply.1} parent=1 // pred_fallthru
      _
    // Predicated region
    $region18: #{_glass_blur_apply.1} parent=1 // pred_check
      _
    $region19: #{_glass_blur_apply.1} parent=1 // pred_check_branch
      %30 = sbr.rel (0) target = $region21
    $region20: #{_glass_blur_apply.1} parent=1 // pred_region
      _
    $region21: #{_glass_blur_apply.1} parent=1 // pred_fallthru
      _
    // Predicated region
    $region22: #{_glass_blur_apply.1} parent=1 // pred_check
      _
    $region23: #{_glass_blur_apply.1} parent=1 // pred_check_branch
      %32 = sbr.rel (0) target = $region25
    $region24: #{_glass_blur_apply.1} parent=1 // pred_region
      _
    $region25: #{_glass_blur_apply.1} parent=1 // pred_fallthru
      _
    // Predicated region
    $region26: #{_glass_blur_apply.1} parent=1 // pred_check
      _
    $region27: #{_glass_blur_apply.1} parent=1 // pred_check_branch
      %34 = sbr.rel (0) target = $region29
    $region28: #{_glass_blur_apply.1} parent=1 // pred_region
      _
    $region29: #{_glass_blur_apply.1} parent=1 // pred_fallthru
      _
    // Predicated region
    $region30: #{_glass_blur_apply.1} parent=1 // pred_check
      _
    $region31: #{_glass_blur_apply.1} parent=1 // pred_check_branch
      %36 = sbr.rel (0) target = $region33
    $region32: #{_glass_blur_apply.1} parent=1 // pred_region
      %37 = dma.done [#allocation3], 16
    $region33: #{_glass_blur_apply.1} parent=1 // pred_fallthru
      _
    %38 = sfence
    %v40 = vld [vmem:[%s1] sm:$0x3]
    %v41 = vld [vmem:[%s1 + $0x2] sm:$0x3]
    %v42 = vunpack.c.0.s8 %v40
    %v43 = vunpack.c.0.s8 %v41
    %v44 = vand.u32 %v42, 255
    %v45 = vand.u32 %v43, 255
    %v46 = vlaneseq
    %v47 = vshrl.u32 %v46, 7
    %v48 = vadd.s32 %v47, 8
    %v49 = vld [vmem:[%s2] sm:$0x1]
    %v50 = vlaneseq
    %v51 = vshrl.u32 %v50, 7
    %v52 = vsub.s32 0, %v51
    %v53 = vrot.slane %v49, %v52
    %vm54 = vcmp.ge.s32.totalorder %v47, 1
    %vm55 = vcmp.ge.s32.totalorder %v48, 1
    %vm56 = vcmp.le.s32.totalorder %v47, 15
    %vm57 = vcmp.le.s32.totalorder %v48, 15
    %vm58 = vmand %vm54, %vm56
    %vm59 = vmand %vm55, %vm57
    %vm60 = vcmp.ge.s32.totalorder %v53, 1
    %vm61 = vmand %vm58, %vm60
    %vm62 = vmand %vm59, %vm60
    %vm63 = vcmp.le.s32.totalorder %v53, 15
    %vm64 = vmand %vm61, %vm63
    %vm65 = vmand %vm62, %vm63
    %s66 = sld [smem:[#allocation2]]
    %s67 = sld [smem:[#allocation2 + $0x2]]
    %v68 = vstv %s66
    %v69 = vsub.s32 %v68, %v53
    %v70 = vmul.u32 %v69, %v69
    %v71 = vstv %s67
    %v72 = vsub.s32 %v71, %v47
    %v73 = vsub.s32 %v71, %v48
    %v74 = vmul.u32 %v72, %v72
    %v75 = vmul.u32 %v73, %v73
    %v76 = vadd.s32 %v70, %v74
    %v77 = vadd.s32 %v70, %v75
    %s78 = sld [smem:[#allocation2 + $0x4]]
    %v79 = vstv %s78
    %vm80 = vcmp.le.s32.totalorder %v76, %v79
    %vm81 = vcmp.le.s32.totalorder %v77, %v79
    %s82 = sld [smem:[#allocation2 + $0x6]]
    %v83 = vstv %s82
    %vm84 = vcmp.le.s32.totalorder %v76, %v83
    %vm85 = vcmp.le.s32.totalorder %v77, %v83
    %s86 = sld [smem:[#allocation2 + $0x1]]
    %s87 = sld [smem:[#allocation2 + $0x3]]
    %v88 = vstv %s86
    %v89 = vsub.s32 %v88, %v53
    %v90 = vmul.u32 %v89, %v89
    %v91 = vstv %s87
    %v92 = vsub.s32 %v91, %v47
    %v93 = vsub.s32 %v91, %v48
    %v94 = vmul.u32 %v92, %v92
    %v95 = vmul.u32 %v93, %v93
    %v96 = vadd.s32 %v90, %v94
    %v97 = vadd.s32 %v90, %v95
    %s98 = sld [smem:[#allocation2 + $0x5]]
    %v99 = vstv %s98
    %vm100 = vcmp.le.s32.totalorder %v96, %v99
    %vm101 = vcmp.le.s32.totalorder %v97, %v99
    %s102 = sld [smem:[#allocation2 + $0x7]]
    %v103 = vstv %s102
    %vm104 = vcmp.le.s32.totalorder %v96, %v103
    %vm105 = vcmp.le.s32.totalorder %v97, %v103
    %vm106 = vmor %vm80, %vm100
    %vm107 = vmor %vm81, %vm101
    %vm108 = vmor %vm84, %vm104
    %vm109 = vmor %vm85, %vm105
    %vm110 = vmxor %vm106, 1
    %vm111 = vmxor %vm107, 1
    %vm112 = vmand %vm64, %vm110
    %vm113 = vmand %vm65, %vm111
    %vm114 = vmand %vm64, %vm108
    %vm115 = vmand %vm65, %vm109
    %v116 = vld [vmem:[%s3] sm:$0x3]
    %v117 = vld [vmem:[%s3 + $0x2] sm:$0x3]
    %v118 = vunpack.c.0.s8 %v116
    %v119 = vunpack.c.0.s8 %v117
    %v120 = vld [vmem:[%s4] sm:$0x3]
    %v121 = vld [vmem:[%s4 + $0x2] sm:$0x3]
    %v122 = vunpack.c.0.s8 %v120
    %v123 = vunpack.c.0.s8 %v121
    %v124 = vrot.slane %v44, 7
    %v125 = vrot.slane %v45, 7
    %vm126 = vcmp.lt.s32.totalorder %v47, 1
    %v127 = vsel %vm126, %v124, %v125
    %v128 = vsel %vm126, %v125, %v124
    %vm129 = vcmp.eq.s32.totalorder %v118, 4294967295
    %vm130 = vcmp.eq.s32.totalorder %v119, 4294967295
    %vm131 = vmand %vm112, %vm129
    %vm132 = vmand %vm113, %vm130
    %133 = vrot.lane.b32.xlu0 %v128, 3
    %v134 = vpop.permute.xlu0 %133
    %135 = vrot.lane.b32.xlu0 %v127, 3
    %v136 = vpop.permute.xlu0 %135
    %vm137 = vcmp.eq.s32.totalorder %v122, 4294967295
    %vm138 = vcmp.eq.s32.totalorder %v123, 4294967295
    %vm139 = vmand %vm131, %vm137
    %vm140 = vmand %vm132, %vm138
    %v141 = vsel %vm139, %v134, %v44
    %v142 = vsel %vm140, %v136, %v45
    %vm143 = vcmp.eq.s32.totalorder %v122, 0
    %vm144 = vcmp.eq.s32.totalorder %v123, 0
    %vm145 = vmand %vm131, %vm143
    %vm146 = vmand %vm132, %vm144
    %v147 = vsel %vm145, %v128, %v141
    %v148 = vsel %vm146, %v127, %v142
    %vm149 = vcmp.eq.s32.totalorder %v118, 0
    %vm150 = vcmp.eq.s32.totalorder %v119, 0
    %vm151 = vmand %vm112, %vm149
    %vm152 = vmand %vm113, %vm150
    %153 = vrot.lane.b32.xlu0 %v44, 3
    %v154 = vpop.permute.xlu0 %153
    %155 = vrot.lane.b32.xlu0 %v45, 3
    %v156 = vpop.permute.xlu0 %155
    %vm157 = vmand %vm151, %vm137
    %vm158 = vmand %vm152, %vm138
    %v159 = vsel %vm157, %v154, %v147
    %v160 = vsel %vm158, %v156, %v148
    %v161 = vcvt.s32.f32 %v159
    %v162 = vcvt.s32.f32 %v160
    %v163 = vpack.c.bf16 %v162, %v161
    %v164 = vld [vmem:[%s5] sm:$0xf]
    %v165 = vld [vmem:[%s5 + $0x4] sm:$0xf]
    %v168 = vunpack.c.l.b16 %v164
    %v169 = vunpack.c.l.b16 %v165
    %v170 = vpack.c.b16 %v169, %v168
    %vm171 = vcmask 130048
    %v173 = vsel %vm171, %v170, 0
    %175 = vmatprep.subr.bf16.mxu0 0
    %176 = vmatpush1.bf16.msra.mxu0 %v163
    %177 = vmatprep.subr.bf16.mxu0 0
    %178 = vmatpush1.bf16.msra.mxu0 0
    %179 = vmatprep.subr.bf16.mxu0 0
    %180 = vmatpush1.bf16.msra.mxu0 0
    %181 = vmatprep.subr.bf16.mxu0 0
    %182 = vmatpush1.bf16.msra.mxu0 0
    %183 = vmatprep.subr.bf16.mxu0 0
    %184 = vmatpush1.bf16.msra.mxu0 0
    %185 = vmatprep.subr.bf16.mxu0 0
    %186 = vmatpush1.bf16.msra.mxu0 0
    %187 = vmatprep.subr.bf16.mxu0 0
    %188 = vmatpush1.bf16.msra.mxu0 0
    %189 = vmatprep.subr.bf16.mxu0 0
    %190 = vmatpush1.bf16.msra.mxu0 0
    %191 = vmatprep.subr.bf16.mxu0 0
    %192 = vmatpush1.bf16.msra.mxu0 0
    %193 = vmatprep.subr.bf16.mxu0 0
    %194 = vmatpush1.bf16.msra.mxu0 0
    %195 = vmatprep.subr.bf16.mxu0 0
    %196 = vmatpush1.bf16.msra.mxu0 0
    %197 = vmatprep.subr.bf16.mxu0 0
    %198 = vmatpush1.bf16.msra.mxu0 0
    %199 = vmatprep.subr.bf16.mxu0 0
    %200 = vmatpush1.bf16.msra.mxu0 0
    %201 = vmatprep.subr.bf16.mxu0 0
    %202 = vmatpush1.bf16.msra.mxu0 0
    %203 = vmatprep.subr.bf16.mxu0 0
    %204 = vmatpush1.bf16.msra.mxu0 0
    %205 = vmatprep.subr.bf16.mxu0 0
    %206 = vmatpush1.bf16.msra.mxu0 0
    %207 = vmatprep.mubr.bf16.mxu0 0
    %208 = vmatmul.mubr.bf16.gmra.mrb[0].mxu0 %v173
    %v209 = vpop.f32.mrb[0].mxu0
    %v210 = vadd.f32 0.0, %v209
    %v211 = vpop.f32.mrb[0].mxu0
    %v212 = vpop.f32.mrb[0].mxu0
    %v213 = vadd.f32 0.0, %v212
    %v214 = vpop.f32.mrb[0].mxu0
    %215 = vdwg.mxu0
    %v216 = vld [vmem:[%s6 + $0x4] sm:$0x1]
    %v217 = vlaneseq
    %v218 = vshrl.u32 %v217, 7
    %v219 = vsub.s32 0, %v218
    %v220 = vrot.slane %v216, %v219
    %v221 = vmul.f32 %v220, %v210
    %v222 = vmul.f32 %v220, %v213
    %v223 = vld [vmem:[%s6] sm:$0x1]
    %224 = vrot.lane.b32.xlu0 %v210, 12
    %v225 = vpop.permute.xlu0 %224
    %226 = vrot.lane.b32.xlu0 %v213, 12
    %v227 = vpop.permute.xlu0 %226
    %v228 = vlaneseq
    %v229 = vshrl.u32 %v228, 7
    %v230 = vsub.s32 0, %v229
    %v231 = vrot.slane %v223, %v230
    %v232 = vmul.f32 %v231, %v225
    %v233 = vmul.f32 %v231, %v227
    %v234 = vadd.f32 %v221, %v232
    %v235 = vadd.f32 %v222, %v233
    %v236 = vld [vmem:[%s6 + $0x1] sm:$0x1]
    %237 = vrot.lane.b32.xlu0 %v210, 9
    %v238 = vpop.permute.xlu0 %237
    %239 = vrot.lane.b32.xlu0 %v213, 9
    %v240 = vpop.permute.xlu0 %239
    %v241 = vlaneseq
    %v242 = vshrl.u32 %v241, 7
    %v243 = vsub.s32 0, %v242
    %v244 = vrot.slane %v236, %v243
    %v245 = vmul.f32 %v244, %v238
    %v246 = vmul.f32 %v244, %v240
    %v247 = vadd.f32 %v234, %v245
    %v248 = vadd.f32 %v235, %v246
    %v249 = vld [vmem:[%s6 + $0x2] sm:$0x1]
    %250 = vrot.lane.b32.xlu0 %v210, 6
    %v251 = vpop.permute.xlu0 %250
    %252 = vrot.lane.b32.xlu0 %v213, 6
    %v253 = vpop.permute.xlu0 %252
    %v254 = vlaneseq
    %v255 = vshrl.u32 %v254, 7
    %v256 = vsub.s32 0, %v255
    %v257 = vrot.slane %v249, %v256
    %v258 = vmul.f32 %v257, %v251
    %v259 = vmul.f32 %v257, %v253
    %v260 = vadd.f32 %v247, %v258
    %v261 = vadd.f32 %v248, %v259
    %v262 = vld [vmem:[%s6 + $0x3] sm:$0x1]
    %263 = vrot.lane.b32.xlu0 %v210, 3
    %v264 = vpop.permute.xlu0 %263
    %265 = vrot.lane.b32.xlu0 %v213, 3
    %v266 = vpop.permute.xlu0 %265
    %v267 = vlaneseq
    %v268 = vshrl.u32 %v267, 7
    %v269 = vsub.s32 0, %v268
    %v270 = vrot.slane %v262, %v269
    %v271 = vmul.f32 %v270, %v264
    %v272 = vmul.f32 %v270, %v266
    %v273 = vadd.f32 %v260, %v271
    %v274 = vadd.f32 %v261, %v272
    %v275 = vld [vmem:[%s6 + $0x5] sm:$0x1]
    %276 = vrot.lane.b32.xlu0 %v210, 125
    %v277 = vpop.permute.xlu0 %276
    %278 = vrot.lane.b32.xlu0 %v213, 125
    %v279 = vpop.permute.xlu0 %278
    %v280 = vlaneseq
    %v281 = vshrl.u32 %v280, 7
    %v282 = vsub.s32 0, %v281
    %v283 = vrot.slane %v275, %v282
    %v284 = vmul.f32 %v283, %v277
    %v285 = vmul.f32 %v283, %v279
    %v286 = vadd.f32 %v273, %v284
    %v287 = vadd.f32 %v274, %v285
    %v288 = vld [vmem:[%s6 + $0x6] sm:$0x1]
    %289 = vrot.lane.b32.xlu0 %v210, 122
    %v290 = vpop.permute.xlu0 %289
    %291 = vrot.lane.b32.xlu0 %v213, 122
    %v292 = vpop.permute.xlu0 %291
    %v293 = vlaneseq
    %v294 = vshrl.u32 %v293, 7
    %v295 = vsub.s32 0, %v294
    %v296 = vrot.slane %v288, %v295
    %v297 = vmul.f32 %v296, %v290
    %v298 = vmul.f32 %v296, %v292
    %v299 = vadd.f32 %v286, %v297
    %v300 = vadd.f32 %v287, %v298
    %v301 = vld [vmem:[%s6 + $0x7] sm:$0x1]
    %302 = vrot.lane.b32.xlu0 %v210, 119
    %v303 = vpop.permute.xlu0 %302
    %304 = vrot.lane.b32.xlu0 %v213, 119
    %v305 = vpop.permute.xlu0 %304
    %v306 = vlaneseq
    %v307 = vshrl.u32 %v306, 7
    %v308 = vsub.s32 0, %v307
    %v309 = vrot.slane %v301, %v308
    %v310 = vmul.f32 %v309, %v303
    %v311 = vmul.f32 %v309, %v305
    %v312 = vadd.f32 %v299, %v310
    %v313 = vadd.f32 %v300, %v311
    %v314 = vld [vmem:[%s6 + $0x8] sm:$0x1]
    %315 = vrot.lane.b32.xlu0 %v210, 116
    %v316 = vpop.permute.xlu0 %315
    %317 = vrot.lane.b32.xlu0 %v213, 116
    %v318 = vpop.permute.xlu0 %317
    %v319 = vlaneseq
    %v320 = vshrl.u32 %v319, 7
    %v321 = vsub.s32 0, %v320
    %v322 = vrot.slane %v314, %v321
    %v323 = vmul.f32 %v322, %v316
    %v324 = vmul.f32 %v322, %v318
    %v325 = vadd.f32 %v312, %v323
    %v326 = vadd.f32 %v313, %v324
    %v327 = vmax.f32 %v325, 0.0
    %v328 = vmax.f32 %v326, 0.0
    %v329 = vmin.f32 %v327, 255.0
    %v330 = vmin.f32 %v328, 255.0
    %v331 = vcvt.f32.s32.to.zero.pseudo %v329
    %v332 = vcvt.f32.s32.to.zero.pseudo %v330
    %v333 = vsel %vm114, %v44, %v331
    %v334 = vsel %vm115, %v45, %v332
    %v335 = vpack.c.b16 %v333, %v333
    %v336 = vpack.c.b8 %v335, %v335
    %v337 = vpack.c.b16 %v334, %v334
    %v338 = vpack.c.b8 %v337, %v337
    %339 = vst [vmem:[%s7] sm:$0x3] %v336
    %340 = vst [vmem:[%s7 + $0x2] sm:$0x3] %v338
    // Predicated region
    $region34: #{_glass_blur_apply.1} parent=1 // pred_check
      _
    $region35: #{_glass_blur_apply.1} parent=1 // pred_check_branch
      %342 = sbr.rel (0) target = $region37
    $region36: #{_glass_blur_apply.1} parent=1 // pred_region
      _
    $region37: #{_glass_blur_apply.1} parent=1 // pred_fallthru
      _
    // Predicated region
    $region38: #{_glass_blur_apply.1} parent=1 // pred_check
      _
    $region39: #{_glass_blur_apply.1} parent=1 // pred_check_branch
      %344 = sbr.rel (0) target = $region41
    $region40: #{_glass_blur_apply.1} parent=1 // pred_region
      _
    $region41: #{_glass_blur_apply.1} parent=1 // pred_fallthru
      _
    %345 = vsyncpa [#allocation3], 1

</llo_original>
